<compile_context>
chip_gen: v5e
topology: v5e:2x2
jax: 0.10.0
libtpu: 0.0.40
codegen_flags: <defaults>
</compile_context>

<pallas_src>
import numpy as np
import jax
import jax.numpy as jnp
from jax.experimental import pallas as pl
from jax.experimental.pallas import tpu as pltpu

# ---------------------------------------------------------------------------
# Synthetic "config_geography" (deterministic, defined in-script).
# Feature layout of both y_pred and y_true:  [coords(3) | kg(31) | date(2)]  -> F = 36
# ---------------------------------------------------------------------------
N_COORD = 3
N_KG = 31          # Koeppen-Geiger classes (0 = water/sea)
N_DATE = 2
N_FEAT = N_COORD + N_KG + N_DATE

POS_COORDS = (0, N_COORD)
POS_KG = (N_COORD, N_COORD + N_KG)
POS_DATE = (N_COORD + N_KG, N_FEAT)

# climate_class -> list of KG sub-class indices (the kg_map grouping in the torch module)
CLIMATE_CLASSES = {
    0: [0],                       # water / sea
    1: [1, 2, 3],                 # A - tropical
    2: [4, 5, 6, 7],              # B - arid
    3: list(range(8, 17)),        # C - temperate
    4: list(range(17, 29)),       # D - continental
    5: [29, 30],                  # E - polar
}
N_CLIMATE = len(CLIMATE_CLASSES)
# the in-kernel group-mean trick relies on each climate class covering a contiguous KG range
for _c, _idxs in CLIMATE_CLASSES.items():
    assert _idxs == list(range(_idxs[0], _idxs[-1] + 1)), "climate classes must be contiguous"

_W = np.array([1.0, 5.0, 8.0])
_W = _W / _W.sum()
W_COORD, W_KG, W_DATE = float(_W[0]), float(_W[1]), float(_W[2])
KG_WEIGHT = 0.5  # hierarchical_kg_loss default weight


# ---------------------------------------------------------------------------
# In-kernel helpers (trace-time Python; all ops are VPU / XLU / EUP friendly)
# ---------------------------------------------------------------------------
def _soft_ce_sum(logits, targets):
    """sum over rows of -sum_c targets * log_softmax(logits); returns (1, 1)."""
    m = jnp.max(logits, axis=1, keepdims=True)
    z = logits - m
    lse = jnp.log(jnp.sum(jnp.exp(z), axis=1, keepdims=True))
    return jnp.sum(targets * (lse - z), keepdims=True)


def _climate_group_means(kg):
    """Per-climate-class mean of KG columns as a list of (B,1) arrays.

    Static contiguous lane slices + row-sums -> no matmul, no grouping-matrix input.
    """
    out = []
    for c in range(N_CLIMATE):
        idxs = CLIMATE_CLASSES[c]
        lo, hi = idxs[0], idxs[-1] + 1
        out.append(jnp.sum(kg[:, lo:hi], axis=1, keepdims=True) * (1.0 / len(idxs)))
    return out


def _soft_ce_sum_groups(logit_list, target_list):
    """Soft cross-entropy over the 6 climate classes without materializing a (B,6) array."""
    m = logit_list[0]
    for x in logit_list[1:]:
        m = jnp.maximum(m, x)
    zs = [x - m for x in logit_list]
    sum_exp = None
    for z in zs:
        e = jnp.exp(z)
        sum_exp = e if sum_exp is None else sum_exp + e
    lse = jnp.log(sum_exp)                                   # (B, 1)
    ce = None
    for z, t in zip(zs, target_list):
        term = t * (lse - z)                                 # -t * log_softmax
        ce = term if ce is None else ce + term
    return jnp.sum(ce, keepdims=True)                        # (1, 1)


# ---------------------------------------------------------------------------
# Pallas kernel: 2 whole-array inputs, 1 packed lane-dense output.
# ---------------------------------------------------------------------------
def _geo_loss_kernel(pred_ref, true_ref, out_ref):
    pred = pred_ref[...]                                     # [B, 36] f32
    true = true_ref[...]

    coord_p = pred[:, POS_COORDS[0]:POS_COORDS[1]]
    kg_p    = pred[:, POS_KG[0]:POS_KG[1]]
    date_p  = pred[:, POS_DATE[0]:POS_DATE[1]]
    coord_t = true[:, POS_COORDS[0]:POS_COORDS[1]]
    kg_t    = true[:, POS_KG[0]:POS_KG[1]]
    date_t  = true[:, POS_DATE[0]:POS_DATE[1]]

    batch = pred.shape[0]

    # non_sea_patches = where(kg_true[:, 0] < 0.95) -> row mask; shared reciprocal is hoisted.
    mask = (kg_t[:, 0:1] < 0.95).astype(jnp.float32)         # [B, 1]
    n_sel = jnp.sum(mask, keepdims=True)                     # (1, 1)
    inv_n = 1.0 / n_sel                                      # inf when all-sea -> 0*inf = NaN (torch mean-over-empty)

    coord_loss = jnp.sum((coord_p - coord_t) ** 2 * mask, keepdims=True) * inv_n * (1.0 / N_COORD)
    date_loss  = jnp.sum((date_p - date_t) ** 2 * mask, keepdims=True) * inv_n * (1.0 / N_DATE)

    # hierarchical KG loss (soft-target cross-entropy, intentionally NOT masked, like the torch ref)
    subclass_loss = _soft_ce_sum(kg_p, kg_t) * (1.0 / batch)
    cls_p = _climate_group_means(kg_p)
    cls_t = _climate_group_means(kg_t)
    class_loss = _soft_ce_sum_groups(cls_p, cls_t) * (1.0 / batch)
    kg_loss = KG_WEIGHT * subclass_loss + (1.0 - KG_WEIGHT) * class_loss

    total = W_COORD * coord_loss + W_KG * kg_loss + W_DATE * date_loss
    sea_flag = (n_sel < 1.0).astype(jnp.float32)             # only_sea indicator

    # Pack the 5 scalars into one lane-dense (1, 128) tile -> single store + single writeback DMA.
    lane = jax.lax.broadcasted_iota(jnp.int32, (1, 128), 1)
    packed = jnp.where(lane == 0, total,
             jnp.where(lane == 1, coord_loss,
             jnp.where(lane == 2, kg_loss,
             jnp.where(lane == 3, date_loss,
             jnp.where(lane == 4, sea_flag, jnp.zeros_like(total))))))
    out_ref[...] = packed


# ---------------------------------------------------------------------------
# Wrapper (jitted, returns device arrays only -- no host sync inside)
# ---------------------------------------------------------------------------
@jax.jit
def geographical_loss(y_pred, y_true):
    y_pred = y_pred.astype(jnp.float32)
    y_true = y_true.astype(jnp.float32)

    vmem = pltpu.MemorySpace.VMEM
    out = pl.pallas_call(
        _geo_loss_kernel,
        out_shape=jax.ShapeDtypeStruct((1, 128), jnp.float32),
        # tiny whole arrays -> single resident block, no grid needed
        in_specs=[pl.BlockSpec(memory_space=vmem)] * 2,
        out_specs=pl.BlockSpec(memory_space=vmem),
    )(y_pred, y_true)

    total      = out[0, 0]
    coord_loss = out[0, 1]
    kg_loss    = out[0, 2]
    date_loss  = out[0, 3]
    only_sea   = out[0, 4] > 0.5   # device bool scalar (caller may read back if a Python bool is needed)
    return total, coord_loss, kg_loss, date_loss, only_sea


# ---------------------------------------------------------------------------
# Pure-JAX reference (mirrors the torch module) for a correctness check.
# ---------------------------------------------------------------------------
def _group_matrix() -> jnp.ndarray:
    g = np.zeros((N_KG, N_CLIMATE), np.float32)
    for c, idxs in CLIMATE_CLASSES.items():
        g[np.array(idxs), c] = 1.0 / len(idxs)
    return jnp.asarray(g)


def _reference(y_pred, y_true):
    coord_p = y_pred[:, POS_COORDS[0]:POS_COORDS[1]]
    coord_t = y_true[:, POS_COORDS[0]:POS_COORDS[1]]
    kg_p = y_pred[:, POS_KG[0]:POS_KG[1]]
    kg_t = y_true[:, POS_KG[0]:POS_KG[1]]
    date_p = y_pred[:, POS_DATE[0]:POS_DATE[1]]
    date_t = y_true[:, POS_DATE[0]:POS_DATE[1]]

    sel = np.where(np.asarray(kg_t[:, 0]) < 0.95)[0]
    only_sea = len(sel) < 1

    coord_loss = jnp.mean((coord_p[sel] - coord_t[sel]) ** 2)
    date_loss = jnp.mean((date_p[sel] - date_t[sel]) ** 2)

    def soft_ce(logits, targets):
        lsm = jax.nn.log_softmax(logits, axis=1)
        return jnp.mean(-jnp.sum(targets * lsm, axis=1))

    g = _group_matrix()
    climate_p = kg_p @ g
    climate_t = kg_t @ g
    kg_loss = KG_WEIGHT * soft_ce(kg_p, kg_t) + (1.0 - KG_WEIGHT) * soft_ce(climate_p, climate_t)

    total = W_COORD * coord_loss + W_KG * kg_loss + W_DATE * date_loss
    return total, coord_loss, kg_loss, date_loss, only_sea


if __name__ == "__main__":
    key = jax.random.PRNGKey(0)
    B = 8
    k1, k2, k3, k4 = jax.random.split(key, 4)

    y_pred = jax.random.normal(k1, (B, N_FEAT), jnp.float32)

    coord_t = jax.random.uniform(k2, (B, N_COORD), jnp.float32)
    kg_t = jax.random.uniform(k3, (B, N_KG), jnp.float32)
    kg_t = kg_t / jnp.sum(kg_t, axis=1, keepdims=True)        # soft KG targets
    date_t = jax.random.uniform(k4, (B, N_DATE), jnp.float32)
    y_true = jnp.concatenate([coord_t, kg_t, date_t], axis=1)
    # make patch 0 a "sea" patch (kg_true[:, 0] >= 0.95) to exercise the non-sea mask
    y_true = y_true.at[0, POS_KG[0]].set(1.0)

    total, cl, kl, dl, only_sea = geographical_loss(y_pred, y_true)
    jax.block_until_ready(total)

    r_total, r_cl, r_kl, r_dl, r_only_sea = _reference(y_pred, y_true)
    np.testing.assert_allclose(float(total), float(r_total), rtol=1e-4, atol=1e-5)
    np.testing.assert_allclose(float(cl), float(r_cl), rtol=1e-4, atol=1e-5)
    np.testing.assert_allclose(float(kl), float(r_kl), rtol=1e-4, atol=1e-5)
    np.testing.assert_allclose(float(dl), float(r_dl), rtol=1e-4, atol=1e-5)
    assert bool(only_sea) == r_only_sea   # host readback only here, in the test harness

    print("KERNEL_OK")
</pallas_src>

<mosaic_0001>
module attributes {stable_mosaic.version = 11 : i64} {
  func.func @_geo_loss_kernel(%arg0: memref<8x36xf32, #tpu.memory_space<vmem>>, %arg1: memref<8x36xf32, #tpu.memory_space<vmem>>, %arg2: memref<1x128xf32, #tpu.memory_space<vmem>>) attributes {dimension_semantics = [], scalar_prefetch = 0 : i64, scratch_operands = 0 : i64, tpu.core_type = #tpu.core_type<tc>} {
    %c0 = arith.constant 0 : index
    %c0_0 = arith.constant 0 : index
    %0 = vector.load %arg0[%c0, %c0_0] : memref<8x36xf32, #tpu.memory_space<vmem>>, vector<8x36xf32>
    %c0_1 = arith.constant 0 : index
    %c0_2 = arith.constant 0 : index
    %1 = vector.load %arg1[%c0_1, %c0_2] : memref<8x36xf32, #tpu.memory_space<vmem>>, vector<8x36xf32>
    %2 = vector.extract_strided_slice %0 {offsets = [0, 0], sizes = [8, 3], strides = [1, 1]} : vector<8x36xf32> to vector<8x3xf32>
    %3 = vector.extract_strided_slice %0 {offsets = [0, 3], sizes = [8, 31], strides = [1, 1]} : vector<8x36xf32> to vector<8x31xf32>
    %4 = vector.extract_strided_slice %0 {offsets = [0, 34], sizes = [8, 2], strides = [1, 1]} : vector<8x36xf32> to vector<8x2xf32>
    %5 = vector.extract_strided_slice %1 {offsets = [0, 0], sizes = [8, 3], strides = [1, 1]} : vector<8x36xf32> to vector<8x3xf32>
    %6 = vector.extract_strided_slice %1 {offsets = [0, 3], sizes = [8, 31], strides = [1, 1]} : vector<8x36xf32> to vector<8x31xf32>
    %7 = vector.extract_strided_slice %1 {offsets = [0, 34], sizes = [8, 2], strides = [1, 1]} : vector<8x36xf32> to vector<8x2xf32>
    %8 = vector.extract_strided_slice %6 {offsets = [0, 0], sizes = [8, 1], strides = [1, 1]} : vector<8x31xf32> to vector<8x1xf32>
    %cst = arith.constant 0.949999988 : f32
    %9 = vector.broadcast %cst : f32 to vector<8x1xf32>
    %10 = arith.cmpf olt, %8, %9 : vector<8x1xf32>
    %11 = arith.extui %10 : vector<8x1xi1> to vector<8x1xi32>
    %12 = arith.sitofp %11 : vector<8x1xi32> to vector<8x1xf32>
    %13 = vector.shape_cast %12 : vector<8x1xf32> to vector<1x8x1xf32>
    %cst_3 = arith.constant dense<0.000000e+00> : vector<1xf32>
    %14 = vector.multi_reduction <add>, %13, %cst_3 [1, 2] : vector<1x8x1xf32> to vector<1xf32>
    %15 = vector.shape_cast %14 : vector<1xf32> to vector<1x1x1xf32>
    %16 = vector.extract %15[0, 0, 0] : f32 from vector<1x1x1xf32>
    %17 = vector.broadcast %16 : f32 to vector<1x1xf32>
    %cst_4 = arith.constant 1.000000e+00 : f32
    %18 = vector.broadcast %cst_4 : f32 to vector<1x1xf32>
    %19 = arith.divf %18, %17 : vector<1x1xf32>
    %20 = arith.subf %2, %5 : vector<8x3xf32>
    %21 = arith.mulf %20, %20 : vector<8x3xf32>
    %22 = vector.broadcast %12 : vector<8x1xf32> to vector<8x3xf32>
    %23 = arith.mulf %21, %22 : vector<8x3xf32>
    %24 = vector.shape_cast %23 : vector<8x3xf32> to vector<1x8x3xf32>
    %cst_5 = arith.constant dense<0.000000e+00> : vector<1xf32>
    %25 = vector.multi_reduction <add>, %24, %cst_5 [1, 2] : vector<1x8x3xf32> to vector<1xf32>
    %26 = vector.shape_cast %25 : vector<1xf32> to vector<1x1x1xf32>
    %27 = vector.extract %26[0, 0, 0] : f32 from vector<1x1x1xf32>
    %28 = vector.broadcast %27 : f32 to vector<1x1xf32>
    %29 = arith.mulf %28, %19 : vector<1x1xf32>
    %cst_6 = arith.constant 0.333333343 : f32
    %30 = vector.broadcast %cst_6 : f32 to vector<1x1xf32>
    %31 = arith.mulf %29, %30 : vector<1x1xf32>
    %32 = arith.subf %4, %7 : vector<8x2xf32>
    %33 = arith.mulf %32, %32 : vector<8x2xf32>
    %34 = vector.broadcast %12 : vector<8x1xf32> to vector<8x2xf32>
    %35 = arith.mulf %33, %34 : vector<8x2xf32>
    %36 = vector.shape_cast %35 : vector<8x2xf32> to vector<1x8x2xf32>
    %cst_7 = arith.constant dense<0.000000e+00> : vector<1xf32>
    %37 = vector.multi_reduction <add>, %36, %cst_7 [1, 2] : vector<1x8x2xf32> to vector<1xf32>
    %38 = vector.shape_cast %37 : vector<1xf32> to vector<1x1x1xf32>
    %39 = vector.extract %38[0, 0, 0] : f32 from vector<1x1x1xf32>
    %40 = vector.broadcast %39 : f32 to vector<1x1xf32>
    %41 = arith.mulf %40, %19 : vector<1x1xf32>
    %cst_8 = arith.constant 5.000000e-01 : f32
    %42 = vector.broadcast %cst_8 : f32 to vector<1x1xf32>
    %43 = arith.mulf %41, %42 : vector<1x1xf32>
    %cst_9 = arith.constant dense<0xFF800000> : vector<8xf32>
    %44 = vector.multi_reduction <maximumf>, %3, %cst_9 [1] : vector<8x31xf32> to vector<8xf32>
    %45 = vector.shape_cast %44 : vector<8xf32> to vector<8x1xf32>
    %46 = vector.broadcast %45 : vector<8x1xf32> to vector<8x31xf32>
    %47 = arith.subf %3, %46 : vector<8x31xf32>
    %48 = math.exp %47 : vector<8x31xf32>
    %cst_10 = arith.constant dense<0.000000e+00> : vector<8xf32>
    %49 = vector.multi_reduction <add>, %48, %cst_10 [1] : vector<8x31xf32> to vector<8xf32>
    %50 = vector.shape_cast %49 : vector<8xf32> to vector<8x1xf32>
    %51 = math.log %50 : vector<8x1xf32>
    %52 = vector.broadcast %51 : vector<8x1xf32> to vector<8x31xf32>
    %53 = arith.subf %52, %47 : vector<8x31xf32>
    %54 = arith.mulf %6, %53 : vector<8x31xf32>
    %55 = vector.shape_cast %54 : vector<8x31xf32> to vector<1x8x31xf32>
    %cst_11 = arith.constant dense<0.000000e+00> : vector<1xf32>
    %56 = vector.multi_reduction <add>, %55, %cst_11 [1, 2] : vector<1x8x31xf32> to vector<1xf32>
    %57 = vector.shape_cast %56 : vector<1xf32> to vector<1x1x1xf32>
    %58 = vector.extract %57[0, 0, 0] : f32 from vector<1x1x1xf32>
    %59 = vector.broadcast %58 : f32 to vector<1x1xf32>
    %cst_12 = arith.constant 1.250000e-01 : f32
    %60 = vector.broadcast %cst_12 : f32 to vector<1x1xf32>
    %61 = arith.mulf %59, %60 : vector<1x1xf32>
    %62 = vector.extract_strided_slice %3 {offsets = [0, 0], sizes = [8, 1], strides = [1, 1]} : vector<8x31xf32> to vector<8x1xf32>
    %cst_13 = arith.constant dense<0.000000e+00> : vector<8xf32>
    %63 = vector.multi_reduction <add>, %62, %cst_13 [1] : vector<8x1xf32> to vector<8xf32>
    %64 = vector.shape_cast %63 : vector<8xf32> to vector<8x1xf32>
    %cst_14 = arith.constant 1.000000e+00 : f32
    %65 = vector.broadcast %cst_14 : f32 to vector<8x1xf32>
    %66 = arith.mulf %64, %65 : vector<8x1xf32>
    %67 = vector.extract_strided_slice %3 {offsets = [0, 1], sizes = [8, 3], strides = [1, 1]} : vector<8x31xf32> to vector<8x3xf32>
    %cst_15 = arith.constant dense<0.000000e+00> : vector<8xf32>
    %68 = vector.multi_reduction <add>, %67, %cst_15 [1] : vector<8x3xf32> to vector<8xf32>
    %69 = vector.shape_cast %68 : vector<8xf32> to vector<8x1xf32>
    %cst_16 = arith.constant 0.333333343 : f32
    %70 = vector.broadcast %cst_16 : f32 to vector<8x1xf32>
    %71 = arith.mulf %69, %70 : vector<8x1xf32>
    %72 = vector.extract_strided_slice %3 {offsets = [0, 4], sizes = [8, 4], strides = [1, 1]} : vector<8x31xf32> to vector<8x4xf32>
    %cst_17 = arith.constant dense<0.000000e+00> : vector<8xf32>
    %73 = vector.multi_reduction <add>, %72, %cst_17 [1] : vector<8x4xf32> to vector<8xf32>
    %74 = vector.shape_cast %73 : vector<8xf32> to vector<8x1xf32>
    %cst_18 = arith.constant 2.500000e-01 : f32
    %75 = vector.broadcast %cst_18 : f32 to vector<8x1xf32>
    %76 = arith.mulf %74, %75 : vector<8x1xf32>
    %77 = vector.extract_strided_slice %3 {offsets = [0, 8], sizes = [8, 9], strides = [1, 1]} : vector<8x31xf32> to vector<8x9xf32>
    %cst_19 = arith.constant dense<0.000000e+00> : vector<8xf32>
    %78 = vector.multi_reduction <add>, %77, %cst_19 [1] : vector<8x9xf32> to vector<8xf32>
    %79 = vector.shape_cast %78 : vector<8xf32> to vector<8x1xf32>
    %cst_20 = arith.constant 0.111111112 : f32
    %80 = vector.broadcast %cst_20 : f32 to vector<8x1xf32>
    %81 = arith.mulf %79, %80 : vector<8x1xf32>
    %82 = vector.extract_strided_slice %3 {offsets = [0, 17], sizes = [8, 12], strides = [1, 1]} : vector<8x31xf32> to vector<8x12xf32>
    %cst_21 = arith.constant dense<0.000000e+00> : vector<8xf32>
    %83 = vector.multi_reduction <add>, %82, %cst_21 [1] : vector<8x12xf32> to vector<8xf32>
    %84 = vector.shape_cast %83 : vector<8xf32> to vector<8x1xf32>
    %cst_22 = arith.constant 0.0833333358 : f32
    %85 = vector.broadcast %cst_22 : f32 to vector<8x1xf32>
    %86 = arith.mulf %84, %85 : vector<8x1xf32>
    %87 = vector.extract_strided_slice %3 {offsets = [0, 29], sizes = [8, 2], strides = [1, 1]} : vector<8x31xf32> to vector<8x2xf32>
    %cst_23 = arith.constant dense<0.000000e+00> : vector<8xf32>
    %88 = vector.multi_reduction <add>, %87, %cst_23 [1] : vector<8x2xf32> to vector<8xf32>
    %89 = vector.shape_cast %88 : vector<8xf32> to vector<8x1xf32>
    %cst_24 = arith.constant 5.000000e-01 : f32
    %90 = vector.broadcast %cst_24 : f32 to vector<8x1xf32>
    %91 = arith.mulf %89, %90 : vector<8x1xf32>
    %92 = vector.extract_strided_slice %6 {offsets = [0, 0], sizes = [8, 1], strides = [1, 1]} : vector<8x31xf32> to vector<8x1xf32>
    %cst_25 = arith.constant dense<0.000000e+00> : vector<8xf32>
    %93 = vector.multi_reduction <add>, %92, %cst_25 [1] : vector<8x1xf32> to vector<8xf32>
    %94 = vector.shape_cast %93 : vector<8xf32> to vector<8x1xf32>
    %cst_26 = arith.constant 1.000000e+00 : f32
    %95 = vector.broadcast %cst_26 : f32 to vector<8x1xf32>
    %96 = arith.mulf %94, %95 : vector<8x1xf32>
    %97 = vector.extract_strided_slice %6 {offsets = [0, 1], sizes = [8, 3], strides = [1, 1]} : vector<8x31xf32> to vector<8x3xf32>
    %cst_27 = arith.constant dense<0.000000e+00> : vector<8xf32>
    %98 = vector.multi_reduction <add>, %97, %cst_27 [1] : vector<8x3xf32> to vector<8xf32>
    %99 = vector.shape_cast %98 : vector<8xf32> to vector<8x1xf32>
    %cst_28 = arith.constant 0.333333343 : f32
    %100 = vector.broadcast %cst_28 : f32 to vector<8x1xf32>
    %101 = arith.mulf %99, %100 : vector<8x1xf32>
    %102 = vector.extract_strided_slice %6 {offsets = [0, 4], sizes = [8, 4], strides = [1, 1]} : vector<8x31xf32> to vector<8x4xf32>
    %cst_29 = arith.constant dense<0.000000e+00> : vector<8xf32>
    %103 = vector.multi_reduction <add>, %102, %cst_29 [1] : vector<8x4xf32> to vector<8xf32>
    %104 = vector.shape_cast %103 : vector<8xf32> to vector<8x1xf32>
    %cst_30 = arith.constant 2.500000e-01 : f32
    %105 = vector.broadcast %cst_30 : f32 to vector<8x1xf32>
    %106 = arith.mulf %104, %105 : vector<8x1xf32>
    %107 = vector.extract_strided_slice %6 {offsets = [0, 8], sizes = [8, 9], strides = [1, 1]} : vector<8x31xf32> to vector<8x9xf32>
    %cst_31 = arith.constant dense<0.000000e+00> : vector<8xf32>
    %108 = vector.multi_reduction <add>, %107, %cst_31 [1] : vector<8x9xf32> to vector<8xf32>
    %109 = vector.shape_cast %108 : vector<8xf32> to vector<8x1xf32>
    %cst_32 = arith.constant 0.111111112 : f32
    %110 = vector.broadcast %cst_32 : f32 to vector<8x1xf32>
    %111 = arith.mulf %109, %110 : vector<8x1xf32>
    %112 = vector.extract_strided_slice %6 {offsets = [0, 17], sizes = [8, 12], strides = [1, 1]} : vector<8x31xf32> to vector<8x12xf32>
    %cst_33 = arith.constant dense<0.000000e+00> : vector<8xf32>
    %113 = vector.multi_reduction <add>, %112, %cst_33 [1] : vector<8x12xf32> to vector<8xf32>
    %114 = vector.shape_cast %113 : vector<8xf32> to vector<8x1xf32>
    %cst_34 = arith.constant 0.0833333358 : f32
    %115 = vector.broadcast %cst_34 : f32 to vector<8x1xf32>
    %116 = arith.mulf %114, %115 : vector<8x1xf32>
    %117 = vector.extract_strided_slice %6 {offsets = [0, 29], sizes = [8, 2], strides = [1, 1]} : vector<8x31xf32> to vector<8x2xf32>
    %cst_35 = arith.constant dense<0.000000e+00> : vector<8xf32>
    %118 = vector.multi_reduction <add>, %117, %cst_35 [1] : vector<8x2xf32> to vector<8xf32>
    %119 = vector.shape_cast %118 : vector<8xf32> to vector<8x1xf32>
    %cst_36 = arith.constant 5.000000e-01 : f32
    %120 = vector.broadcast %cst_36 : f32 to vector<8x1xf32>
    %121 = arith.mulf %119, %120 : vector<8x1xf32>
    %122 = arith.maximumf %66, %71 : vector<8x1xf32>
    %123 = arith.maximumf %122, %76 : vector<8x1xf32>
    %124 = arith.maximumf %123, %81 : vector<8x1xf32>
    %125 = arith.maximumf %124, %86 : vector<8x1xf32>
    %126 = arith.maximumf %125, %91 : vector<8x1xf32>
    %127 = arith.subf %66, %126 : vector<8x1xf32>
    %128 = arith.subf %71, %126 : vector<8x1xf32>
    %129 = arith.subf %76, %126 : vector<8x1xf32>
    %130 = arith.subf %81, %126 : vector<8x1xf32>
    %131 = arith.subf %86, %126 : vector<8x1xf32>
    %132 = arith.subf %91, %126 : vector<8x1xf32>
    %133 = math.exp %127 : vector<8x1xf32>
    %134 = math.exp %128 : vector<8x1xf32>
    %135 = arith.addf %133, %134 : vector<8x1xf32>
    %136 = math.exp %129 : vector<8x1xf32>
    %137 = arith.addf %135, %136 : vector<8x1xf32>
    %138 = math.exp %130 : vector<8x1xf32>
    %139 = arith.addf %137, %138 : vector<8x1xf32>
    %140 = math.exp %131 : vector<8x1xf32>
    %141 = arith.addf %139, %140 : vector<8x1xf32>
    %142 = math.exp %132 : vector<8x1xf32>
    %143 = arith.addf %141, %142 : vector<8x1xf32>
    %144 = math.log %143 : vector<8x1xf32>
    %145 = arith.subf %144, %127 : vector<8x1xf32>
    %146 = arith.mulf %96, %145 : vector<8x1xf32>
    %147 = arith.subf %144, %128 : vector<8x1xf32>
    %148 = arith.mulf %101, %147 : vector<8x1xf32>
    %149 = arith.addf %146, %148 : vector<8x1xf32>
    %150 = arith.subf %144, %129 : vector<8x1xf32>
    %151 = arith.mulf %106, %150 : vector<8x1xf32>
    %152 = arith.addf %149, %151 : vector<8x1xf32>
    %153 = arith.subf %144, %130 : vector<8x1xf32>
    %154 = arith.mulf %111, %153 : vector<8x1xf32>
    %155 = arith.addf %152, %154 : vector<8x1xf32>
    %156 = arith.subf %144, %131 : vector<8x1xf32>
    %157 = arith.mulf %116, %156 : vector<8x1xf32>
    %158 = arith.addf %155, %157 : vector<8x1xf32>
    %159 = arith.subf %144, %132 : vector<8x1xf32>
    %160 = arith.mulf %121, %159 : vector<8x1xf32>
    %161 = arith.addf %158, %160 : vector<8x1xf32>
    %162 = vector.shape_cast %161 : vector<8x1xf32> to vector<1x8x1xf32>
    %cst_37 = arith.constant dense<0.000000e+00> : vector<1xf32>
    %163 = vector.multi_reduction <add>, %162, %cst_37 [1, 2] : vector<1x8x1xf32> to vector<1xf32>
    %164 = vector.shape_cast %163 : vector<1xf32> to vector<1x1x1xf32>
    %165 = vector.extract %164[0, 0, 0] : f32 from vector<1x1x1xf32>
    %166 = vector.broadcast %165 : f32 to vector<1x1xf32>
    %cst_38 = arith.constant 1.250000e-01 : f32
    %167 = vector.broadcast %cst_38 : f32 to vector<1x1xf32>
    %168 = arith.mulf %166, %167 : vector<1x1xf32>
    %cst_39 = arith.constant 5.000000e-01 : f32
    %169 = vector.broadcast %cst_39 : f32 to vector<1x1xf32>
    %170 = arith.mulf %169, %61 : vector<1x1xf32>
    %cst_40 = arith.constant 5.000000e-01 : f32
    %171 = vector.broadcast %cst_40 : f32 to vector<1x1xf32>
    %172 = arith.mulf %171, %168 : vector<1x1xf32>
    %173 = arith.addf %170, %172 : vector<1x1xf32>
    %cst_41 = arith.constant 0.0714285746 : f32
    %174 = vector.broadcast %cst_41 : f32 to vector<1x1xf32>
    %175 = arith.mulf %174, %31 : vector<1x1xf32>
    %cst_42 = arith.constant 0.357142866 : f32
    %176 = vector.broadcast %cst_42 : f32 to vector<1x1xf32>
    %177 = arith.mulf %176, %173 : vector<1x1xf32>
    %178 = arith.addf %175, %177 : vector<1x1xf32>
    %cst_43 = arith.constant 0.571428597 : f32
    %179 = vector.broadcast %cst_43 : f32 to vector<1x1xf32>
    %180 = arith.mulf %179, %43 : vector<1x1xf32>
    %181 = arith.addf %178, %180 : vector<1x1xf32>
    %cst_44 = arith.constant 1.000000e+00 : f32
    %182 = vector.broadcast %cst_44 : f32 to vector<1x1xf32>
    %183 = arith.cmpf olt, %17, %182 : vector<1x1xf32>
    %184 = arith.extui %183 : vector<1x1xi1> to vector<1x1xi32>
    %185 = arith.sitofp %184 : vector<1x1xi32> to vector<1x1xf32>
    %186 = tpu.iota {dimensions = array<i32: 1>} : vector<1x128xi32>
    %c0_i32 = arith.constant 0 : i32
    %187 = vector.broadcast %c0_i32 : i32 to vector<1x128xi32>
    %188 = arith.cmpi eq, %186, %187 : vector<1x128xi32>
    %c1_i32 = arith.constant 1 : i32
    %189 = vector.broadcast %c1_i32 : i32 to vector<1x128xi32>
    %190 = arith.cmpi eq, %186, %189 : vector<1x128xi32>
    %c2_i32 = arith.constant 2 : i32
    %191 = vector.broadcast %c2_i32 : i32 to vector<1x128xi32>
    %192 = arith.cmpi eq, %186, %191 : vector<1x128xi32>
    %c3_i32 = arith.constant 3 : i32
    %193 = vector.broadcast %c3_i32 : i32 to vector<1x128xi32>
    %194 = arith.cmpi eq, %186, %193 : vector<1x128xi32>
    %c4_i32 = arith.constant 4 : i32
    %195 = vector.broadcast %c4_i32 : i32 to vector<1x128xi32>
    %196 = arith.cmpi eq, %186, %195 : vector<1x128xi32>
    %cst_45 = arith.constant 0.000000e+00 : f32
    %197 = vector.broadcast %cst_45 : f32 to vector<1x1xf32>
    %198 = vector.shape_cast %185 : vector<1x1xf32> to vector<1x1xf32>
    %199 = vector.broadcast %198 : vector<1x1xf32> to vector<1x128xf32>
    %200 = vector.shape_cast %197 : vector<1x1xf32> to vector<1x1xf32>
    %201 = vector.broadcast %200 : vector<1x1xf32> to vector<1x128xf32>
    %202 = arith.select %196, %199, %201 : vector<1x128xi1>, vector<1x128xf32>
    %203 = vector.shape_cast %43 : vector<1x1xf32> to vector<1x1xf32>
    %204 = vector.broadcast %203 : vector<1x1xf32> to vector<1x128xf32>
    %205 = arith.select %194, %204, %202 : vector<1x128xi1>, vector<1x128xf32>
    %206 = vector.shape_cast %173 : vector<1x1xf32> to vector<1x1xf32>
    %207 = vector.broadcast %206 : vector<1x1xf32> to vector<1x128xf32>
    %208 = arith.select %192, %207, %205 : vector<1x128xi1>, vector<1x128xf32>
    %209 = vector.shape_cast %31 : vector<1x1xf32> to vector<1x1xf32>
    %210 = vector.broadcast %209 : vector<1x1xf32> to vector<1x128xf32>
    %211 = arith.select %190, %210, %208 : vector<1x128xi1>, vector<1x128xf32>
    %212 = vector.shape_cast %181 : vector<1x1xf32> to vector<1x1xf32>
    %213 = vector.broadcast %212 : vector<1x1xf32> to vector<1x128xf32>
    %214 = arith.select %188, %213, %211 : vector<1x128xi1>, vector<1x128xf32>
    %c0_46 = arith.constant 0 : index
    %c0_47 = arith.constant 0 : index
    %215 = vector.load %arg2[%c0_46, %c0_47] : memref<1x128xf32, #tpu.memory_space<vmem>>, vector<1x128xf32>
    tpu.vector_store %arg2[%c0_46, %c0_47], %214 {strides = array<i32>} : memref<1x128xf32, #tpu.memory_space<vmem>>, vector<1x128xf32>,
    return
  }
}

</mosaic_0001>

<llo_original>
// kernel: geographical_loss.1
$region0: #{geographical_loss.1}
  #allocation0 [shape = 'u32[]', space=smem, size = 0x4, offset = 0x4, fixed_abs, tag = 'smem constant byte address 0x4 - core index']
  #allocation1 [shape = 'u32[72,128]{1,0:T(1,128)}', space=vmem, size = 0x9000, scoped, tag = 'internal scratch']
  %s0 = inlined_call_operand.hbm [shape: f32[8,36], index: 0, kind: input, shape index: {}]
  %s1 = inlined_call_operand.hbm [shape: f32[8,36], index: 1, kind: input, shape index: {}]
  %s2 = inlined_call_operand.vmem [shape: f32[1,128], index: 2, kind: output, shape index: {}]
  %s3 = sld [smem:[#allocation0]]
  $region26: #{geographical_loss.1} parent=0
    _
  %s5 = ssub.s32 1, %s3
  %s6 = scalar_select 0, %s5, %s3
  $region1: #{geographical_loss.1} parent=0
    #allocation2 [shape = 'u8[4096]{0}', space=vmem, size = 0x1000, scoped, tag = 'input window, operand 0, single buffered']
    #allocation3 [shape = 's32[1]{0}', space=sflag, size = 0x4, scoped, tag = 'scoped memory for geographical_loss.1']
    #allocation4 [shape = 'u8[4096]{0}', space=vmem, size = 0x1000, scoped, tag = 'input window, operand 1, single buffered']
    #allocation5 [shape = 's32[1]{0}', space=sflag, size = 0x4, scoped, tag = 'scoped memory for geographical_loss.1']
    %7 = vsyncpa [#allocation3], 0
    %8 = vsyncpa [#allocation5], 0
    // Predicated region
    $region2: #{geographical_loss.1} parent=1 // pred_check
      _
    $region3: #{geographical_loss.1} parent=1 // pred_check_branch
      %10 = sbr.rel (0) target = $region5
    $region4: #{geographical_loss.1} parent=1 // pred_region
      %12 = vsyncadd [#allocation3], 0
      %s14 = sshll.u32 %s0, 4
      %s15 = int_to_ptr.hbm [resolvable:$true] %s14
      %s16 = sshll.u32 [#allocation2], 4
      %s17 = int_to_ptr.vmem [resolvable:$true] %s16
      %19 = dma.hbm_to_vmem [thread:$0]  %s15, 128, %s17, [#allocation3]
    $region5: #{geographical_loss.1} parent=1 // pred_fallthru
      _
    // Predicated region
    $region6: #{geographical_loss.1} parent=1 // pred_check
      _
    $region7: #{geographical_loss.1} parent=1 // pred_check_branch
      %21 = sbr.rel (0) target = $region9
    $region8: #{geographical_loss.1} parent=1 // pred_region
      %23 = vsyncadd [#allocation5], 0
      %s25 = sshll.u32 %s1, 4
      %s26 = int_to_ptr.hbm [resolvable:$true] %s25
      %s27 = sshll.u32 [#allocation4], 4
      %s28 = int_to_ptr.vmem [resolvable:$true] %s27
      %30 = dma.hbm_to_vmem [thread:$0]  %s26, 128, %s28, [#allocation5]
    $region9: #{geographical_loss.1} parent=1 // pred_fallthru
      _
    // Predicated region
    $region10: #{geographical_loss.1} parent=1 // pred_check
      _
    $region11: #{geographical_loss.1} parent=1 // pred_check_branch
      %32 = sbr.rel (0) target = $region13
    $region12: #{geographical_loss.1} parent=1 // pred_region
      %34 = dma.done [#allocation3], 128
    $region13: #{geographical_loss.1} parent=1 // pred_fallthru
      _
    // Predicated region
    $region14: #{geographical_loss.1} parent=1 // pred_check
      _
    $region15: #{geographical_loss.1} parent=1 // pred_check_branch
      %36 = sbr.rel (0) target = $region17
    $region16: #{geographical_loss.1} parent=1 // pred_region
      %38 = dma.done [#allocation5], 128
    $region17: #{geographical_loss.1} parent=1 // pred_fallthru
      _
    %v39 = vld [vmem:[#allocation2] sm:$0xff]
    %v40 = vld [vmem:[#allocation4] sm:$0xff]
    %vm41 = vcmp.lt.f32.partialorder %v40, 0.95
    %v42 = vsel %vm41, 1, 0
    %v43 = vcvt.s32.f32 %v42
    %45 = vrot.lane.b32.xlu0 %v43, 125
    %v46 = vpop.permute.xlu0 %45
    %vm48 = vcmask 7168
    %v49 = vsel %vm48, %v46, 0.0
    %50 = vadd.xlane.f32.xlu0 %v49
    %v51 = vpop.xlane.xlu0 %50
    %v52 = vrot.slane %v51, 4
    %v53 = vadd.f32 %v51, %v52
    %v54 = vrot.slane %v53, 2
    %v55 = vadd.f32 %v53, %v54
    %v56 = vrot.slane %v55, 1
    %v57 = vadd.f32 %v55, %v56
    %s58 = vtos %v57
    %v59 = vstv %s58
    %v60 = vrcp.pop %v59
    %v61 = vmul.f32 %v59, %v60
    %v62 = vsub.f32 1.0, %v61
    %v63 = vmul.f32 %v60, %v62
    %v64 = vadd.f32 %v60, %v63
    %vm65 = vweird.f32 %v59
    %vm66 = vweird.f32 %v60
    %vm67 = vmor %vm65, %vm66
    %v68 = vsel %vm67, %v60, %v64
    %v69 = vand.u32 2147483647, %v59
    %vm70 = vcmp.eq.f32.partialorder %v69, 8.507059e+37
    %v71 = vand.u32 %v59, 2147483648
    %v72 = vor.u32 1.1754944e-38, %v71
    %v73 = vsel %vm70, %v72, %v68
    %v74 = vmul.f32 1.0, %v73
    %v75 = vsub.f32 %v39, %v40
    %v76 = vmul.f32 %v75, %v75
    %77 = vset.pattern.permute.xlu0 3
    %78 = vperm.xlu0 %77, %v43
    %v79 = vpop.permute.xlu0 %78
    %v81 = vmul.f32 %v76, %v79
    %vm82 = vcmask 23552
    %v83 = vsel %vm82, %v81, 0.0
    %84 = vadd.xlane.f32.xlu0 %v83
    %v85 = vpop.xlane.xlu0 %84
    %v86 = vrot.slane %v85, 4
    %v87 = vadd.f32 %v85, %v86
    %v88 = vrot.slane %v87, 2
    %v89 = vadd.f32 %v87, %v88
    %v90 = vrot.slane %v89, 1
    %v91 = vadd.f32 %v89, %v90
    %s92 = vtos %v91
    %v93 = vstv %s92
    %v94 = vmul.f32 %v93, %v74
    %v95 = vmul.f32 %v94, 0.33333334
    %97 = vrot.lane.b32.xlu0 %v81, 94
    %v98 = vpop.permute.xlu0 %97
    %vm100 = vcmask 15360
    %v101 = vsel %vm100, %v98, 0.0
    %102 = vadd.xlane.f32.xlu0 %v101
    %v103 = vpop.xlane.xlu0 %102
    %v104 = vrot.slane %v103, 4
    %v105 = vadd.f32 %v103, %v104
    %v106 = vrot.slane %v105, 2
    %v107 = vadd.f32 %v105, %v106
    %v108 = vrot.slane %v107, 1
    %v109 = vadd.f32 %v107, %v108
    %s110 = vtos %v109
    %v111 = vstv %s110
    %v112 = vmul.f32 %v111, %v74
    %v113 = vmul.f32 %v112, 0.5
    %vm114 = vcmask 277528
    %v115 = vsel %vm114, %v39, -inf
    %116 = vmax.xlane.f32.xlu0 %v115
    %v117 = vpop.xlane.xlu0 %116
    %v118 = vsub.f32 %v39, %v117
    %v119 = vmul.f32 %v118, 1.442695
    %v120 = vpow.pop %v119
    %122 = vrot.lane.b32.xlu0 %v120, 125
    %v123 = vpop.permute.xlu0 %122
    %vm125 = vcmask 252928
    %v126 = vsel %vm125, %v123, 0.0
    %127 = vadd.xlane.f32.xlu0 %v126
    %v128 = vpop.xlane.xlu0 %127
    %v129 = vlog2.pop %v128
    %v130 = vmul.f32 %v129, 0.6931472
    %v131 = vsub.f32 %v130, %v118
    %v132 = vmul.f32 %v40, %v131
    %134 = vrot.lane.b32.xlu0 %v132, 125
    %v135 = vpop.permute.xlu0 %134
    %v137 = vsel %vm125, %v135, 0.0
    %138 = vadd.xlane.f32.xlu0 %v137
    %v139 = vpop.xlane.xlu0 %138
    %v140 = vrot.slane %v139, 4
    %v141 = vadd.f32 %v139, %v140
    %v142 = vrot.slane %v141, 2
    %v143 = vadd.f32 %v141, %v142
    %v144 = vrot.slane %v143, 1
    %v145 = vadd.f32 %v143, %v144
    %s146 = vtos %v145
    %v147 = vstv %s146
    %v148 = vmul.f32 %v147, 0.125
    %v149 = vadd.f32 %v39, 0.0
    %151 = vrot.lane.b32.xlu0 %v39, 124
    %v152 = vpop.permute.xlu0 %151
    %v154 = vsel %vm82, %v152, 0.0
    %155 = vadd.xlane.f32.xlu0 %v154
    %v156 = vpop.xlane.xlu0 %155
    %v157 = vmul.f32 %v156, 0.33333334
    %158 = vrot.lane.b32.xlu0 %v39, 121
    %v159 = vpop.permute.xlu0 %158
    %vm161 = vcmask 31744
    %v162 = vsel %vm161, %v159, 0.0
    %163 = vadd.xlane.f32.xlu0 %v162
    %v164 = vpop.xlane.xlu0 %163
    %v165 = vmul.f32 %v164, 0.25
    %166 = vrot.lane.b32.xlu0 %v39, 117
    %v167 = vpop.permute.xlu0 %166
    %vm169 = vcmask 72704
    %v170 = vsel %vm169, %v167, 0.0
    %171 = vadd.xlane.f32.xlu0 %v170
    %v172 = vpop.xlane.xlu0 %171
    %v173 = vmul.f32 %v172, 0.11111111
    %174 = vrot.lane.b32.xlu0 %v39, 108
    %v175 = vpop.permute.xlu0 %174
    %vm177 = vcmask 97280
    %v178 = vsel %vm177, %v175, 0.0
    %179 = vadd.xlane.f32.xlu0 %v178
    %v180 = vpop.xlane.xlu0 %179
    %v181 = vmul.f32 %v180, 0.083333336
    %182 = vrot.lane.b32.xlu0 %v39, 96
    %v183 = vpop.permute.xlu0 %182
    %v185 = vsel %vm100, %v183, 0.0
    %186 = vadd.xlane.f32.xlu0 %v185
    %v187 = vpop.xlane.xlu0 %186
    %v188 = vmul.f32 %v187, 0.5
    %v189 = vadd.f32 %v40, 0.0
    %191 = vrot.lane.b32.xlu0 %v40, 124
    %v192 = vpop.permute.xlu0 %191
    %v194 = vsel %vm82, %v192, 0.0
    %195 = vadd.xlane.f32.xlu0 %v194
    %v196 = vpop.xlane.xlu0 %195
    %v197 = vmul.f32 %v196, 0.33333334
    %198 = vrot.lane.b32.xlu0 %v40, 121
    %v199 = vpop.permute.xlu0 %198
    %v201 = vsel %vm161, %v199, 0.0
    %202 = vadd.xlane.f32.xlu0 %v201
    %v203 = vpop.xlane.xlu0 %202
    %v204 = vmul.f32 %v203, 0.25
    %205 = vrot.lane.b32.xlu0 %v40, 117
    %v206 = vpop.permute.xlu0 %205
    %v208 = vsel %vm169, %v206, 0.0
    %209 = vadd.xlane.f32.xlu0 %v208
    %v210 = vpop.xlane.xlu0 %209
    %v211 = vmul.f32 %v210, 0.11111111
    %212 = vrot.lane.b32.xlu0 %v40, 108
    %v213 = vpop.permute.xlu0 %212
    %v215 = vsel %vm177, %v213, 0.0
    %216 = vadd.xlane.f32.xlu0 %v215
    %v217 = vpop.xlane.xlu0 %216
    %v218 = vmul.f32 %v217, 0.083333336
    %219 = vrot.lane.b32.xlu0 %v40, 96
    %v220 = vpop.permute.xlu0 %219
    %v222 = vsel %vm100, %v220, 0.0
    %223 = vadd.xlane.f32.xlu0 %v222
    %v224 = vpop.xlane.xlu0 %223
    %v225 = vmul.f32 %v224, 0.5
    %v226 = vmax.f32 %v149, %v157
    %v227 = vmax.f32 %v226, %v165
    %v228 = vmax.f32 %v227, %v173
    %v229 = vmax.f32 %v228, %v181
    %v230 = vmax.f32 %v229, %v188
    %v231 = vsub.f32 %v149, %v230
    %v232 = vsub.f32 %v157, %v230
    %v233 = vsub.f32 %v165, %v230
    %v234 = vsub.f32 %v173, %v230
    %v235 = vsub.f32 %v181, %v230
    %v236 = vsub.f32 %v188, %v230
    %v237 = vmul.f32 %v231, 1.442695
    %v238 = vpow.pop %v237
    %v239 = vmul.f32 %v232, 1.442695
    %v240 = vpow.pop %v239
    %v241 = vadd.f32 %v238, %v240
    %v242 = vmul.f32 %v233, 1.442695
    %v243 = vpow.pop %v242
    %v244 = vadd.f32 %v241, %v243
    %v245 = vmul.f32 %v234, 1.442695
    %v246 = vpow.pop %v245
    %v247 = vadd.f32 %v244, %v246
    %v248 = vmul.f32 %v235, 1.442695
    %v249 = vpow.pop %v248
    %v250 = vadd.f32 %v247, %v249
    %v251 = vmul.f32 %v236, 1.442695
    %v252 = vpow.pop %v251
    %v253 = vadd.f32 %v250, %v252
    %v254 = vlog2.pop %v253
    %v255 = vmul.f32 %v254, 0.6931472
    %v256 = vsub.f32 %v255, %v231
    %v257 = vmul.f32 %v189, %v256
    %v258 = vsub.f32 %v255, %v232
    %v259 = vmul.f32 %v197, %v258
    %v260 = vadd.f32 %v257, %v259
    %v261 = vsub.f32 %v255, %v233
    %v262 = vmul.f32 %v204, %v261
    %v263 = vadd.f32 %v260, %v262
    %v264 = vsub.f32 %v255, %v234
    %v265 = vmul.f32 %v211, %v264
    %v266 = vadd.f32 %v263, %v265
    %v267 = vsub.f32 %v255, %v235
    %v268 = vmul.f32 %v218, %v267
    %v269 = vadd.f32 %v266, %v268
    %v270 = vsub.f32 %v255, %v236
    %v271 = vmul.f32 %v225, %v270
    %v272 = vadd.f32 %v269, %v271
    %274 = vrot.lane.b32.xlu0 %v272, 125
    %v275 = vpop.permute.xlu0 %274
    %v277 = vsel %vm48, %v275, 0.0
    %278 = vadd.xlane.f32.xlu0 %v277
    %v279 = vpop.xlane.xlu0 %278
    %v280 = vrot.slane %v279, 4
    %v281 = vadd.f32 %v279, %v280
    %v282 = vrot.slane %v281, 2
    %v283 = vadd.f32 %v281, %v282
    %v284 = vrot.slane %v283, 1
    %v285 = vadd.f32 %v283, %v284
    %s286 = vtos %v285
    %v287 = vstv %s286
    %v288 = vmul.f32 %v287, 0.125
    %v289 = vmul.f32 %v148, 0.5
    %v290 = vmul.f32 %v288, 0.5
    %v291 = vadd.f32 %v289, %v290
    %v292 = vmul.f32 %v95, 0.071428575
    %v293 = vmul.f32 %v291, 0.35714287
    %v294 = vadd.f32 %v292, %v293
    %v295 = vmul.f32 %v113, 0.5714286
    %v296 = vadd.f32 %v294, %v295
    %vm297 = vcmp.lt.f32.partialorder %v59, 1.0
    %v298 = vsel %vm297, 1, 0
    %v299 = vcvt.s32.f32 %v298
    %v300 = vlaneseq
    %v301 = vand.u32 %v300, 127
    %vm302 = vcmp.eq.s32.totalorder %v301, 0
    %vm303 = vcmp.eq.s32.totalorder %v301, 1
    %vm304 = vcmp.eq.s32.totalorder %v301, 2
    %vm305 = vcmp.eq.s32.totalorder %v301, 3
    %vm306 = vcmp.eq.s32.totalorder %v301, 4
    %v307 = vsel %vm306, %v299, 0.0
    %v308 = vsel %vm305, %v113, %v307
    %v309 = vsel %vm304, %v291, %v308
    %v310 = vsel %vm303, %v95, %v309
    %v311 = vsel %vm302, %v296, %v310
    %312 = vst [vmem:[%s2] sm:$0x1] %v311
    // Predicated region
    $region18: #{geographical_loss.1} parent=1 // pred_check
      _
    $region19: #{geographical_loss.1} parent=1 // pred_check_branch
      %314 = sbr.rel (0) target = $region21
    $region20: #{geographical_loss.1} parent=1 // pred_region
      _
    $region21: #{geographical_loss.1} parent=1 // pred_fallthru
      _
    // Predicated region
    $region22: #{geographical_loss.1} parent=1 // pred_check
      _
    $region23: #{geographical_loss.1} parent=1 // pred_check_branch
      %316 = sbr.rel (0) target = $region25
    $region24: #{geographical_loss.1} parent=1 // pred_region
      _
    $region25: #{geographical_loss.1} parent=1 // pred_fallthru
      _
    %317 = vsyncpa [#allocation3], 1
    %318 = vsyncpa [#allocation5], 1

</llo_original>
